<compile_context>
chip_gen: v7x
topology: tpu7x:2x2x1
jax: 0.10.0
libtpu: 0.0.40
codegen_flags: <defaults>
</compile_context>

<pallas_src>
import jax
import jax.numpy as jnp
from jax import lax
from jax.experimental import pallas as pl
from jax.experimental.pallas import tpu as pltpu


def _round_up(x, m):
    return ((x + m - 1) // m) * m


def _conv_mm_kernel(cols_ref, w_ref, o_ref):
    # cols_ref: (KKC, T)       bf16      im2col tile (one image, T spatial positions)
    # w_ref   : (Cout_p, KKC)  bf16      weight slab (constant index_map -> loaded once)
    # o_ref   : (Cout_p, T)    f32/bf16  lane-dense, channel-major output tile
    o_ref[...] = jnp.dot(
        w_ref[...], cols_ref[...],
        preferred_element_type=jnp.float32).astype(o_ref.dtype)


def _choose_spatial_tile(hw_p, n_batch, kkc_p, cout_p, out_bytes, budget_bytes):
    """Largest lane-aligned spatial tile dividing hw_p that fits the VMEM budget.

    Per-tile VMEM = double-buffered bf16 cols tile + double-buffered output
    tile + resident weight slab. When possible keep >= 2 total grid programs
    (software pipelining; both TensorCores on v7x get work).
    """
    candidates = (32768, 16384, 8192, 4096, 2048, 1024, 512, 256, 128)

    def vmem_bytes(t):
        return (2 * kkc_p * t * 2            # double-buffered bf16 cols tile
                + 2 * cout_p * t * out_bytes  # double-buffered output tile
                + cout_p * kkc_p * 2)         # resident bf16 weight slab

    for require_two_programs in (True, False):
        for t in candidates:
            if hw_p % t != 0:
                continue
            if vmem_bytes(t) > budget_bytes:
                continue
            if require_two_programs and n_batch * (hw_p // t) < 2:
                continue
            return t
    return 128  # hw_p is always a multiple of 128


def basic_unit_forward(x_nchw, weight_oihw, dilate, out_dtype=jnp.float32):
    """Forward pass of BasicUnit.

    x_nchw     : (N, Cin, H, W)     float32
    weight_oihw: (Cout, Cin, K, K)  float32 (PyTorch layout)
    dilate     : int (== padding == dilation)
    out_dtype  : output dtype (f32 default; bf16 halves writeback traffic)
    """
    N, Cin, H, W = x_nchw.shape
    Cout, _, K, _ = weight_oihw.shape
    HW = H * W
    KKC = K * K * Cin
    Cout_p = _round_up(Cout, 8)       # sublane-align channel-major output
    HW_p = _round_up(HW, 128)         # lane-align spatial dim (always)
    KKC_p = _round_up(KKC, 8)         # sublane footprint of the cols tile
    out_bytes = jnp.dtype(out_dtype).itemsize

    # ---- plain-JAX glue: reflect pad, im2col slab, weight slab, bf16 ----
    # PyTorch padding_mode='reflect' == jnp.pad mode='reflect' (edge not repeated);
    # valid as long as dilate < H and dilate < W, same constraint as torch.
    x_pad = jnp.pad(
        x_nchw, ((0, 0), (0, 0), (dilate, dilate), (dilate, dilate)),
        mode="reflect")                                         # (N, Cin, Hp, Wp)

    patches = []
    for i in range(K):
        for j in range(K):
            patches.append(
                x_pad[:, :, i * dilate:i * dilate + H, j * dilate:j * dilate + W])
    cols = jnp.concatenate(patches, axis=1).reshape(N, KKC, HW)  # (N, KKC, HW)
    if HW_p != HW:
        # Keep the lane dim a multiple of 128; padded columns are zeros and
        # produce zero outputs that are sliced off below.
        cols = jnp.pad(cols, ((0, 0), (0, 0), (0, HW_p - HW)))
    cols = cols.astype(jnp.bfloat16)

    # w_slab[co, (i*K + j)*Cin + c] = weight[co, c, i, j]  (matches tap order above)
    w_slab = jnp.transpose(weight_oihw, (0, 2, 3, 1)).reshape(Cout, KKC)
    w_slab = jnp.pad(w_slab, ((0, Cout_p - Cout), (0, 0))).astype(jnp.bfloat16)

    # ---- tile selection with an explicit VMEM budget ----
    # 12 MiB per-block budget keeps double-buffering alive even under the
    # v5e 16 MiB default scoped VMEM and well under v7x's 64 MiB physical.
    vmem_budget = 12 * 1024 * 1024
    T = _choose_spatial_tile(HW_p, N, KKC_p, Cout_p, out_bytes, vmem_budget)
    grid = (N, HW_p // T)

    tile_bytes = (2 * KKC_p * T * 2
                  + 2 * Cout_p * T * out_bytes
                  + Cout_p * KKC_p * 2)
    vmem_limit = int(min(64 * 1024 * 1024,
                         max(2 * tile_bytes, 16 * 1024 * 1024)))

    out = pl.pallas_call(
        _conv_mm_kernel,
        out_shape=jax.ShapeDtypeStruct((N, Cout_p, HW_p), out_dtype),
        grid_spec=pltpu.PrefetchScalarGridSpec(
            num_scalar_prefetch=0,
            grid=grid,
            in_specs=[
                # batch dim squeezed out of the kernel view
                pl.BlockSpec((None, KKC, T), lambda n, t: (n, 0, t)),
                # whole weight slab, constant index_map -> loaded once
                pl.BlockSpec((Cout_p, KKC), lambda n, t: (0, 0)),
            ],
            out_specs=pl.BlockSpec((None, Cout_p, T), lambda n, t: (n, 0, t)),
        ),
        compiler_params=pltpu.CompilerParams(
            dimension_semantics=("parallel", "parallel"),
            vmem_limit_bytes=vmem_limit),
    )(cols, w_slab)

    # Drop channel / spatial padding; result is already channel-major (NCHW).
    return out[:, :Cout, :HW].reshape(N, Cout, H, W)


if __name__ == "__main__":
    # Small shapes consistent with the module.
    N, Cin, H, W = 2, 4, 16, 16
    Cout, K, dilate = 8, 3, 2

    key = jax.random.PRNGKey(0)
    kx, kw = jax.random.split(key)
    x = jax.random.normal(kx, (N, Cin, H, W), dtype=jnp.float32)
    # Deterministic weights (shapes match nn.Conv2d(Cin, Cout, K), no bias).
    weight = jax.random.normal(kw, (Cout, Cin, K, K), dtype=jnp.float32) * 0.1

    out = jax.block_until_ready(basic_unit_forward(x, weight, dilate))

    # Reference: lax dilated conv on the same reflect-padded input, with the
    # same bf16 operands / f32 accumulation as the kernel's MXU path.
    x_pad = jnp.pad(x, ((0, 0), (0, 0), (dilate, dilate), (dilate, dilate)),
                    mode="reflect")
    ref = lax.conv_general_dilated(
        x_pad.astype(jnp.bfloat16), weight.astype(jnp.bfloat16),
        window_strides=(1, 1), padding="VALID",
        rhs_dilation=(dilate, dilate),
        dimension_numbers=("NCHW", "OIHW", "NCHW"),
        preferred_element_type=jnp.float32)

    assert out.shape == (N, Cout, H, W), out.shape
    assert jnp.allclose(out, ref, atol=2e-2, rtol=2e-2), "mismatch vs reference"

    print("KERNEL_OK")
</pallas_src>

<mosaic_0001>
module attributes {stable_mosaic.version = 11 : i64} {
  func.func @_conv_mm_kernel(%arg0: i32, %arg1: i32, %arg2: memref<1x36x256xbf16, #tpu.memory_space<vmem>>, %arg3: memref<8x36xbf16, #tpu.memory_space<vmem>>, %arg4: memref<1x8x256xf32, #tpu.memory_space<vmem>>) attributes {dimension_semantics = [#tpu.dimension_semantics<parallel>, #tpu.dimension_semantics<parallel>], iteration_bounds = array<i64: 2, 1>, scalar_prefetch = 0 : i64, scratch_operands = 0 : i64, tpu.core_type = #tpu.core_type<tc>, window_params = [{transform_indices = @transform_0, window_bounds = array<i64: 1, 36, 256>}, {pipeline_mode = #tpu.pipeline_mode<synchronous>, transform_indices = @transform_1, window_bounds = array<i64: 8, 36>}, {transform_indices = @transform_2, window_bounds = array<i64: 1, 8, 256>}]} {
    %c0 = arith.constant 0 : index
    %c0_0 = arith.constant 0 : index
    %0 = vector.load %arg3[%c0, %c0_0] : memref<8x36xbf16, #tpu.memory_space<vmem>>, vector<8x36xbf16>
    %c0_1 = arith.constant 0 : index
    %c0_2 = arith.constant 0 : index
    %c0_3 = arith.constant 0 : index
    %1 = vector.load %arg2[%c0_1, %c0_2, %c0_3] : memref<1x36x256xbf16, #tpu.memory_space<vmem>>, vector<1x36x256xbf16>
    %2 = vector.shape_cast %1 : vector<1x36x256xbf16> to vector<36x256xbf16>
    %cst = arith.constant dense<0.000000e+00> : vector<8x256xf32>
    %3 = tpu.matmul %0, %2, %cst {dimension_numbers = #tpu.dot_dimension_numbers<[1], [0], [0], [1], [0, 0, 1, 1], [], []>} : vector<8x36xbf16>, vector<36x256xbf16>, vector<8x256xf32> -> vector<8x256xf32>
    %c0_4 = arith.constant 0 : index
    %c0_5 = arith.constant 0 : index
    %c0_6 = arith.constant 0 : index
    %4 = vector.load %arg4[%c0_4, %c0_5, %c0_6] : memref<1x8x256xf32, #tpu.memory_space<vmem>>, vector<1x8x256xf32>
    %5 = vector.shape_cast %4 : vector<1x8x256xf32> to vector<8x256xf32>
    %6 = vector.shape_cast %3 : vector<8x256xf32> to vector<1x8x256xf32>
    tpu.vector_store %arg4[%c0_4, %c0_5, %c0_6], %6 {strides = array<i32>} : memref<1x8x256xf32, #tpu.memory_space<vmem>>, vector<1x8x256xf32>,
    return
  }
  func.func @transform_0(%arg0: i32, %arg1: i32) -> (i32, i32, i32) {
    %c0_i32 = arith.constant 0 : i32
    %c0_i32_0 = arith.constant 0 : i32
    return %arg0, %c0_i32, %arg1 : i32, i32, i32
  }
  func.func @transform_1(%arg0: i32, %arg1: i32) -> (i32, i32) {
    %c0_i32 = arith.constant 0 : i32
    %c0_i32_0 = arith.constant 0 : i32
    %c0_i32_1 = arith.constant 0 : i32
    return %c0_i32, %c0_i32_0 : i32, i32
  }
  func.func @transform_2(%arg0: i32, %arg1: i32) -> (i32, i32, i32) {
    %c0_i32 = arith.constant 0 : i32
    %c0_i32_0 = arith.constant 0 : i32
    return %arg0, %c0_i32, %arg1 : i32, i32, i32
  }
}

</mosaic_0001>

<llo_original>
// kernel: tpu_custom_call.1
$region0: #{tpu_custom_call.1}
  #allocation0 [shape = 'u32[]', space=smem, size = 0x4, offset = 0x4, fixed_abs, tag = 'smem constant byte address 0x4 - core index']
  #allocation1 [shape = 'u32[144,128]{1,0:T(1,128)}', space=vmem, size = 0x12000, scoped, tag = 'internal scratch']
  %s0 = inlined_call_operand.vmem [shape: bf16[2,36,256], index: 0, kind: input, shape index: {}]
  %s1 = inlined_call_operand.vmem [shape: bf16[8,36], index: 1, kind: input, shape index: {}]
  %s2 = inlined_call_operand.hbm [shape: f32[2,8,256], index: 2, kind: output, shape index: {}]
  %s3 = sld [smem:[#allocation0]]
  $region41: #{tpu_custom_call.1} parent=0
    _
  %s5 = ssub.s32 1, %s3
  %s6 = scalar_select 0, %s5, %s3
  $region1: #{tpu_custom_call.1} parent=0
    #allocation2 [shape = 'u8[16384]{0}', space=vmem, size = 0x4000, scoped, tag = 'output window, operand 0']
    #allocation3 [shape = 's32[2]{0}', space=sflag, size = 0x8, scoped, tag = 'scoped memory for tpu_custom_call.1']
    %7 = vsyncpa [#allocation3], 0
    %s8 = scalar_lea.sflag [#allocation3], 1
    %9 = vsyncpa %s8, 0
    loop: start=0, step=1, limit=4
    $region2: #{tpu_custom_call.1} parent=1 // loop_pre_header
      _
    $region3: #{tpu_custom_call.1} parent=1 // loop_header
      %s11 = sphi 0, %s15
      %p12 = scmp.ge.s32.totalorder %s11, 4
      %s18 = sphi 0, %s30
      %s19 = sphi 0, %s26
      %s20 = sphi 0, %s18
      %s21 = sphi 0, %s19
      %s22 = sphi 0, %s20
      %s23 = sphi 0, %s21
      %s35 = sphi 0, %s37
      %s38 = sphi 0, %s35
      %s39 = sphi 0, %s38
      %s55 = sphi 0, %s39
      %s59 = sphi 0, %s59
      %s61 = sphi 0, %s59
      %s62 = sphi 0, %s61
      %s76 = sphi 0, %s62
      %s84 = sphi 0, %s86
      %s87 = sphi 0, %s84
      %s88 = sphi 0, %s87
      %s104 = sphi 0, %s88
    $region4: #{tpu_custom_call.1} parent=1 // loop_header_branch
      %14 = sbr.rel (%p12) target = $region8
    $region5: #{tpu_custom_call.1} parent=1 // loop_body
      %s16 = ssub.s32 %s11, 1
      %s17 = ssub.s32 %s11, 2
      %s24 = sadd.s32 1, %s19
      %p25 = scmp.ge.s32.totalorder %s24, 1
      %s26 = scalar_select %p25, 0, %s24
      %s27 = sadd.s32 1, %s18
      %s28 = scalar_select %p25, %s27, %s18
      %p29 = scmp.ge.s32.totalorder %s28, 2
      %s30 = scalar_select %p29, 0, %s28
      %s31 = ssub.s32 %s18, %s30
      %s32 = ssub.s32 %s19, %s26
      %s33 = sor.u32 %s31, %s32
      %p34 = scmp.eq.s32.totalorder %s33, 0
      %s36 = sadd.s32 %s35, 1
      %s37 = scalar_select %p34, %s35, %s36
      %p40 = pneg %p34
      %p41 = scmp.eq.s32.totalorder %s11, 1
      %p42 = por %p40, %p41
      %p43 = scmp.ne.s32.totalorder %s35, %s38
      %p44 = scmp.eq.s32.totalorder %s11, 0
      %p45 = por %p43, %p44
      %p46 = scmp.ne.s32.totalorder %s35, %s38
      %p47 = scmp.eq.s32.totalorder %s16, 1
      %p48 = por %p46, %p47
      %p49 = scmp.ne.s32.totalorder %s38, %s39
      %p50 = scmp.eq.s32.totalorder %s16, 0
      %p51 = por %p49, %p50
      %p52 = scmp.ne.s32.totalorder %s38, %s39
      %p53 = scmp.eq.s32.totalorder %s17, 1
      %p54 = por %p52, %p53
      %p56 = scmp.ne.s32.totalorder %s39, %s55
      %p57 = scmp.eq.s32.totalorder %s17, 0
      %p58 = por %p56, %p57
      %s60 = sadd.s32 %s59, 1
      %p63 = scmp.eq.s32.totalorder %s11, 1
      %p64 = scmp.ne.s32.totalorder %s59, %s61
      %p65 = scmp.eq.s32.totalorder %s11, 0
      %p66 = por %p64, %p65
      %p67 = scmp.ne.s32.totalorder %s59, %s61
      %p68 = scmp.eq.s32.totalorder %s16, 1
      %p69 = por %p67, %p68
      %p70 = scmp.ne.s32.totalorder %s61, %s62
      %p71 = scmp.eq.s32.totalorder %s16, 0
      %p72 = por %p70, %p71
      %p73 = scmp.ne.s32.totalorder %s61, %s62
      %p74 = scmp.eq.s32.totalorder %s17, 1
      %p75 = por %p73, %p74
      %p77 = scmp.ne.s32.totalorder %s62, %s76
      %p78 = scmp.eq.s32.totalorder %s17, 0
      %p79 = por %p77, %p78
      %s80 = ssub.s32 %s18, %s30
      %s81 = ssub.s32 %s19, %s26
      %s82 = sor.u32 %s80, %s81
      %p83 = scmp.eq.s32.totalorder %s82, 0
      %s85 = sadd.s32 %s84, 1
      %s86 = scalar_select %p83, %s84, %s85
      %p89 = pneg %p83
      %p90 = scmp.eq.s32.totalorder %s11, 1
      %p91 = por %p89, %p90
      %p92 = scmp.ne.s32.totalorder %s84, %s87
      %p93 = scmp.eq.s32.totalorder %s11, 0
      %p94 = por %p92, %p93
      %p95 = scmp.ne.s32.totalorder %s84, %s87
      %p96 = scmp.eq.s32.totalorder %s16, 1
      %p97 = por %p95, %p96
      %p98 = scmp.ne.s32.totalorder %s87, %s88
      %p99 = scmp.eq.s32.totalorder %s16, 0
      %p100 = por %p98, %p99
      %p101 = scmp.ne.s32.totalorder %s87, %s88
      %p102 = scmp.eq.s32.totalorder %s17, 1
      %p103 = por %p101, %p102
      %p105 = scmp.ne.s32.totalorder %s88, %s104
      %p106 = scmp.eq.s32.totalorder %s17, 0
      %p107 = por %p105, %p106
      %p108 = scmp.le.s32.totalorder 1, %s11
      %p109 = scmp.lt.s32.totalorder %s11, 3
      %p110 = pnand %p108, %p109
      %p111 = pneg %p110
      // Predicated region
      $region9: #{tpu_custom_call.1} parent=5 // pred_check
        _
      $region10: #{tpu_custom_call.1} parent=5 // pred_check_branch
        %113 = sbr.rel (%p110) target = $region12
      $region11: #{tpu_custom_call.1} parent=5 // pred_region
        %s114 = ssub.s32 %s11, 1
        // Predicated region
        $region13: #{tpu_custom_call.1} parent=11 // pred_check
          %p115 = pneg %p72
        $region14: #{tpu_custom_call.1} parent=11 // pred_check_branch
          %117 = sbr.rel (%p115) target = $region16
        $region15: #{tpu_custom_call.1} parent=11 // pred_region
          _
        $region16: #{tpu_custom_call.1} parent=11 // pred_fallthru
          _
      $region12: #{tpu_custom_call.1} parent=5 // pred_fallthru
        _
      %p118 = scmp.lt.s32.totalorder %s11, 2
      // Predicated region
      $region17: #{tpu_custom_call.1} parent=5 // pred_check
        %p119 = pneg %p118
      $region18: #{tpu_custom_call.1} parent=5 // pred_check_branch
        %121 = sbr.rel (%p119) target = $region20
      $region19: #{tpu_custom_call.1} parent=5 // pred_region
        // Predicated region
        $region21: #{tpu_custom_call.1} parent=19 // pred_check
          %p122 = pneg %p45
        $region22: #{tpu_custom_call.1} parent=19 // pred_check_branch
          %124 = sbr.rel (%p122) target = $region24
        $region23: #{tpu_custom_call.1} parent=19 // pred_region
          %s125 = smul.u32 2, %s19
          %p126 = scmp.lt.s32.totalorder %s18, 1
          %s127 = scalar_select %p126, %s18, 1
          %p128 = scmp.lt.s32.totalorder %s125, 1
          %s129 = scalar_select %p128, %s125, 1
          %s130 = smul.addr %s127, 10
          %s131 = sadd.s32 %s129, %s130
          %s132 = smul.addr %s131, 4
          %s133 = scalar_lea.vmem %s0, %s132
          %s134 = smul.u32 2, %s19
        $region24: #{tpu_custom_call.1} parent=19 // pred_fallthru
          _
      $region20: #{tpu_custom_call.1} parent=5 // pred_fallthru
        _
      %p135 = scmp.le.s32.totalorder 1, %s11
      %p136 = scmp.lt.s32.totalorder %s11, 3
      %p137 = pnand %p135, %p136
      %p138 = pneg %p137
      // Predicated region
      $region25: #{tpu_custom_call.1} parent=5 // pred_check
        _
      $region26: #{tpu_custom_call.1} parent=5 // pred_check_branch
        %140 = sbr.rel (%p137) target = $region28
      $region27: #{tpu_custom_call.1} parent=5 // pred_region
        %s141 = ssub.s32 %s11, 1
        %s142 = smul.u32 2, %s21
        %p143 = scmp.lt.s32.totalorder %s20, 1
        %s144 = scalar_select %p143, %s20, 1
        %p145 = scmp.lt.s32.totalorder %s142, 1
        %s146 = scalar_select %p145, %s142, 1
        %s147 = smul.addr %s144, 10
        %s148 = sadd.s32 %s146, %s147
        %s149 = smul.addr %s148, 4
        %s150 = scalar_lea.vmem %s0, %s149
        %p151 = pneg %p51
        %p152 = pneg %p48
        %p153 = pneg %p72
        %p154 = pneg %p69
        %p155 = pneg %p100
        %p156 = pneg %p97
        %s157 = sand.u32 %s87, 1
        %s158 = scalar_lea.sflag [#allocation3], %s157
        %s159 = sand.u32 %s87, 1
        %s160 = smul.addr %s159, 16
        %s161 = scalar_lea.vmem [#allocation2], %s160
        %s162 = smul.u32 2, %s21
        %p163 = scmp.lt.s32.totalorder %s20, 1
        %s164 = scalar_select %p163, %s20, 1
        %p165 = scmp.lt.s32.totalorder %s162, 1
        %s166 = scalar_select %p165, %s162, 1
        %s167 = smul.addr %s164, 10
        %s168 = sadd.s32 %s166, %s167
        %s169 = smul.addr %s168, 4
        %s170 = scalar_lea.vmem %s0, %s169
        %s171 = smul.u32 2, %s21
        %s172 = smul.u32 2, %s21
        %v174 = vld [vmem:[%s1] sm:$0xf]
        %v175 = vld [vmem:[%s170] sm:$0xff]
        %v176 = vld [vmem:[%s170 + $0x8] sm:$0xff]
        %v177 = vld [vmem:[%s170 + $0x10] sm:$0xff]
        %v178 = vld [vmem:[%s170 + $0x18] sm:$0xff]
        %v179 = vld [vmem:[%s170 + $0x20] sm:$0x33]
        %v185 = vunpack.c.l.b16 %v175
        %v186 = vunpack.c.h.b16 %v175
        %v187 = vunpack.c.l.b16 %v176
        %v188 = vunpack.c.h.b16 %v176
        %v189 = vunpack.c.l.b16 %v177
        %v190 = vunpack.c.h.b16 %v177
        %v191 = vunpack.c.l.b16 %v178
        %v192 = vunpack.c.h.b16 %v178
        %v193 = vunpack.c.l.b16 %v179
        %v194 = vunpack.c.h.b16 %v179
        %v195 = vpack.c.b16 %v187, %v185
        %v196 = vpack.c.b16 %v188, %v186
        %v197 = vpack.c.b16 %v191, %v189
        %v198 = vpack.c.b16 %v192, %v190
        %v199 = vpack.c.b16 %v193, %v193
        %v200 = vpack.c.b16 %v194, %v194
        %vm205 = vcmask 293888
        %v207 = vsel %vm205, %v174, 0
        %vm209 = vcmask 1041408
        %v211 = vsel %vm209, %v199, 0
        %v214 = vsel %vm209, %v200, 0
        %216 = vmatprep.subr.bf16.mxu0 %v196
        %217 = vmatpush1.bf16.msra.mxu0 %v195
        %218 = vmatprep.subr.bf16.mxu0 %v198
        %219 = vmatpush1.bf16.msra.mxu0 %v197
        %220 = vmatprep.subr.bf16.mxu0 %v214
        %221 = vmatpush1.bf16.msra.mxu0 %v211
        %222 = vmatprep.subr.bf16.mxu0 0
        %223 = vmatpush1.bf16.msra.mxu0 0
        %224 = vmatprep.subr.bf16.mxu0 0
        %225 = vmatpush1.bf16.msra.mxu0 0
        %226 = vmatprep.subr.bf16.mxu0 0
        %227 = vmatpush1.bf16.msra.mxu0 0
        %228 = vmatprep.subr.bf16.mxu0 0
        %229 = vmatpush1.bf16.msra.mxu0 0
        %230 = vmatprep.subr.bf16.mxu0 0
        %231 = vmatpush1.bf16.msra.mxu0 0
        %232 = vmatprep.subr.bf16.mxu0 0
        %233 = vmatpush1.bf16.msra.mxu0 0
        %234 = vmatprep.subr.bf16.mxu0 0
        %235 = vmatpush1.bf16.msra.mxu0 0
        %236 = vmatprep.subr.bf16.mxu0 0
        %237 = vmatpush1.bf16.msra.mxu0 0
        %238 = vmatprep.subr.bf16.mxu0 0
        %239 = vmatpush1.bf16.msra.mxu0 0
        %240 = vmatprep.subr.bf16.mxu0 0
        %241 = vmatpush1.bf16.msra.mxu0 0
        %242 = vmatprep.subr.bf16.mxu0 0
        %243 = vmatpush1.bf16.msra.mxu0 0
        %244 = vmatprep.subr.bf16.mxu0 0
        %245 = vmatpush1.bf16.msra.mxu0 0
        %246 = vmatprep.subr.bf16.mxu0 0
        %247 = vmatpush1.bf16.msra.mxu0 0
        %248 = vmatprep.mubr.bf16.mxu0 0
        %249 = vmatmul.mubr.bf16.gmra.mrb[0].mxu0 %v207
        %v250 = vpop.f32.mrb[0].mxu0
        %v251 = vadd.f32 0.0, %v250
        %v252 = vpop.f32.mrb[0].mxu0
        %v253 = vadd.f32 0.0, %v252
        %v254 = vpop.f32.mrb[0].mxu0
        %v255 = vpop.f32.mrb[0].mxu0
        %256 = vdwg.mxu0
        %257 = vst [vmem:[%s161] sm:$0xff] %v251
        %258 = vst [vmem:[%s161 + $0x8] sm:$0xff] %v253
        %s259 = sand.u32 %s87, 1
        %s260 = scalar_lea.sflag [#allocation3], %s259
        %s261 = sand.u32 %s87, 1
        %s262 = smul.addr %s261, 16
        %s263 = scalar_lea.vmem [#allocation2], %s262
        // Predicated region
        $region29: #{tpu_custom_call.1} parent=27 // pred_check
          %p264 = pneg %p97
        $region30: #{tpu_custom_call.1} parent=27 // pred_check_branch
          %266 = sbr.rel (%p264) target = $region32
        $region31: #{tpu_custom_call.1} parent=27 // pred_region
          %s267 = smul.u32 2, %s21
          %s269 = ssub.s32 256, 256
          %270 = vsyncadd %s260, %s269
          %s271 = smul.addr %s20, 2
          %s272 = sadd.s32 %s267, %s271
          %s273 = smul.addr %s272, 128
          %s274 = scalar_lea.hbm %s2, %s273
          %s276 = sshll.u32 %s263, 4
          %s277 = int_to_ptr.vmem [resolvable:$true] %s276
          %279 = dma.vmem_to_hbm [thread:$0]  %s277, 256, %s274, %s260
        $region32: #{tpu_custom_call.1} parent=27 // pred_fallthru
          _
      $region28: #{tpu_custom_call.1} parent=5 // pred_fallthru
        _
      %p280 = scmp.le.s32.totalorder 2, %s11
      // Predicated region
      $region33: #{tpu_custom_call.1} parent=5 // pred_check
        %p281 = pneg %p280
      $region34: #{tpu_custom_call.1} parent=5 // pred_check_branch
        %283 = sbr.rel (%p281) target = $region36
      $region35: #{tpu_custom_call.1} parent=5 // pred_region
        %s284 = ssub.s32 %s11, 2
        // Predicated region
        $region37: #{tpu_custom_call.1} parent=35 // pred_check
          %p285 = pneg %p103
        $region38: #{tpu_custom_call.1} parent=35 // pred_check_branch
          %287 = sbr.rel (%p285) target = $region40
        $region39: #{tpu_custom_call.1} parent=35 // pred_region
          %s288 = sand.u32 %s88, 1
          %s289 = scalar_lea.sflag [#allocation3], %s288
          %s290 = sand.u32 %s88, 1
          %s291 = smul.addr %s290, 16
          %s292 = scalar_lea.vmem [#allocation2], %s291
          %293 = dma.done %s289, 256
        $region40: #{tpu_custom_call.1} parent=35 // pred_fallthru
          _
      $region36: #{tpu_custom_call.1} parent=5 // pred_fallthru
        _
    $region6: #{tpu_custom_call.1} parent=1 // loop_footer
      %s15 = sadd.s32 1, %s11
    $region7: #{tpu_custom_call.1} parent=1 // loop_footer_branch
      %10 = sbr.rel target = $region3
    $region8: #{tpu_custom_call.1} parent=1 // loop_exit
      _
    %294 = vsyncpa [#allocation3], 1
    %s295 = scalar_lea.sflag [#allocation3], 1
    %296 = vsyncpa %s295, 1

</llo_original>
